<compile_context>
chip_gen: v5e
topology: v5e:2x2
jax: 0.10.0
libtpu: 0.0.40
codegen_flags: <defaults>
</compile_context>

<pallas_src>
import numpy as np
import jax
import jax.numpy as jnp
from jax.experimental import pallas as pl
from jax.experimental.pallas import tpu as pltpu


# ----------------------------------------------------------------------------------
# Shared in-kernel epilogue:
#   per-token L2 norm -> length-masked SUM pool (the 1/len factor of the mean cancels
#   under the following L2 norm) -> final L2 norm -> store (bf16, lane-dense slab).
# ----------------------------------------------------------------------------------
def _l2norm(x):
    return x * jax.lax.rsqrt(jnp.sum(x * x, axis=-1, keepdims=True) + 1e-12)


def _pool_norm_store(h, lens_ref, out_ref, TB, L):
    h = _l2norm(h).reshape(TB, L, -1)                              # f32 math
    tok = jax.lax.broadcasted_iota(jnp.int32, (TB, L), 1)
    mask = (tok < lens_ref[...]).astype(jnp.float32)               # (TB, L)
    pooled = jnp.sum(h * mask[:, :, None], axis=1)                 # (TB, E) masked sum
    # zero-length rows stay exactly zero (rsqrt(eps) * 0); no NaN, no divide.
    out_ref[...] = _l2norm(pooled).astype(out_ref.dtype)


# ----------------------------------------------------------------------------------
# Kernel 1a (dense features, image path):
#   lens:(TB,1) i32, x:(TB,L,Din) bf16, w:(Din,E) bf16 resident, b:(1,E) f32 resident
#   -> out:(TB,E) bf16 unit-norm global embeddings.
# ----------------------------------------------------------------------------------
def _encode_agg_kernel(lens_ref, x_ref, w_ref, b_ref, out_ref):
    TB, L, Din = x_ref.shape
    x = x_ref[...].reshape(TB * L, Din)                            # bf16 straight from HBM
    h = jnp.dot(x, w_ref[...], preferred_element_type=jnp.float32) + b_ref[...]
    _pool_norm_store(h, lens_ref, out_ref, TB, L)


# ----------------------------------------------------------------------------------
# Kernel 1b (fused embedding lookup, caption path, small vocab):
#   lens:(TB,1) i32, ids:(TB,L) i32, ptab:(V,E) bf16 resident (= word_embed @ W_cap),
#   b:(1,E) f32 -> out:(TB,E) bf16.  The gather is a one-hot MXU matmul, so the
#   (B,L,word_dim) gather result never round-trips through HBM.
# ----------------------------------------------------------------------------------
def _embed_encode_agg_kernel(lens_ref, ids_ref, ptab_ref, b_ref, out_ref):
    TB, L = ids_ref.shape
    V = ptab_ref.shape[0]
    onehot = (jax.lax.broadcasted_iota(jnp.int32, (TB, L, V), 2)
              == ids_ref[...][:, :, None]).astype(jnp.bfloat16).reshape(TB * L, V)
    h = jnp.dot(onehot, ptab_ref[...], preferred_element_type=jnp.float32) + b_ref[...]
    _pool_norm_store(h, lens_ref, out_ref, TB, L)


# ----------------------------------------------------------------------------------
# Batch-tile selection: biggest tile within a ~20 MiB streaming budget (vs a 48 MiB
# vmem_limit, safe on v7x's 64 MiB/TC), capped at 512 samples, >= 2 grid steps when
# B allows (v7x megacore), multiple of 16 (bf16 sublane tile) and dividing B so no
# wrapper-side padding of the activations is ever needed.
# ----------------------------------------------------------------------------------
def _pick_tb(B, L, per_sample_bytes, vmem_budget=20 << 20):
    cand = max(16, min(512, vmem_budget // max(per_sample_bytes, 1)))
    if B >= 32:
        cand = min(cand, B // 2)
    tb = min((B // 16) * 16, (cand // 16) * 16)
    while tb >= 16:
        if B % tb == 0:
            return tb
        tb -= 16
    return B   # small / awkward batches: single full block (block == full array dims)


_ENC_COMPILER_PARAMS = pltpu.CompilerParams(
    dimension_semantics=("parallel",),
    vmem_limit_bytes=48 << 20,   # above the 16/32 MiB scoped defaults, below v7x physical
)


def encode_and_aggregate(x, lengths, w, b):
    """x:(B,L,Din) -> (B,E) bf16 unit-norm globals (projection + norm + masked pool + norm)."""
    B, L, Din = x.shape
    E = w.shape[1]
    x = x.astype(jnp.bfloat16)
    # double-buffered x tile + f32 intermediates + output, per sample:
    per_sample = 2 * L * Din * 2 + 2 * L * E * 4 + 4 * E
    TB = _pick_tb(B, L, per_sample)
    lens2d = lengths.astype(jnp.int32).reshape(B, 1)

    return pl.pallas_call(
        _encode_agg_kernel,
        out_shape=jax.ShapeDtypeStruct((B, E), jnp.bfloat16),
        grid_spec=pltpu.PrefetchScalarGridSpec(
            num_scalar_prefetch=0,
            grid=(B // TB,),
            in_specs=[
                pl.BlockSpec((TB, 1), lambda i: (i, 0)),           # lengths
                pl.BlockSpec((TB, L, Din), lambda i: (i, 0, 0)),   # activations (streaming)
                pl.BlockSpec((Din, E), lambda i: (0, 0)),          # weight (resident)
                pl.BlockSpec((1, E), lambda i: (0, 0)),            # bias   (resident)
            ],
            out_specs=pl.BlockSpec((TB, E), lambda i: (i, 0)),     # lane-dense bf16 slab
        ),
        compiler_params=_ENC_COMPILER_PARAMS,
    )(lens2d, x, w.astype(jnp.bfloat16), b.astype(jnp.float32))


def encode_ids_and_aggregate(ids, lengths, proj_table, b):
    """ids:(B,L) int32 + resident (V,E) bf16 pre-projected table -> (B,E) bf16 globals."""
    B, L = ids.shape
    V, E = proj_table.shape
    per_sample = 2 * L * 4 + L * V * 2 + 2 * L * E * 4 + 4 * E
    TB = _pick_tb(B, L, per_sample)
    lens2d = lengths.astype(jnp.int32).reshape(B, 1)

    return pl.pallas_call(
        _embed_encode_agg_kernel,
        out_shape=jax.ShapeDtypeStruct((B, E), jnp.bfloat16),
        grid_spec=pltpu.PrefetchScalarGridSpec(
            num_scalar_prefetch=0,
            grid=(B // TB,),
            in_specs=[
                pl.BlockSpec((TB, 1), lambda i: (i, 0)),           # lengths
                pl.BlockSpec((TB, L), lambda i: (i, 0)),           # token ids (streaming)
                pl.BlockSpec((V, E), lambda i: (0, 0)),            # proj table (resident)
                pl.BlockSpec((1, E), lambda i: (0, 0)),            # bias       (resident)
            ],
            out_specs=pl.BlockSpec((TB, E), lambda i: (i, 0)),
        ),
        compiler_params=_ENC_COMPILER_PARAMS,
    )(lens2d, ids.astype(jnp.int32), proj_table.astype(jnp.bfloat16), b.astype(jnp.float32))


# ----------------------------------------------------------------------------------
# Kernel 2: SimCosine + final permute(1, 0).
#   Inputs are unit-norm bf16 from kernel 1, so cosine == plain trans_b dot product:
#   out[j, i] = <cap[j], img[i]>, f32 accumulate / f32 output.
# ----------------------------------------------------------------------------------
def _cosine_sim_t_kernel(cap_ref, img_ref, out_ref):
    out_ref[...] = jax.lax.dot_general(
        cap_ref[...], img_ref[...],
        dimension_numbers=(((1,), (1,)), ((), ())),
        preferred_element_type=jnp.float32,
    )


def _prep_sim_operand(x):
    """Pick a lane-dense tile (multiple of 128, >=2 grid steps) and pad the tiny (B,E)
    operand if needed; small batches use one full-axis block (no relayout)."""
    n = x.shape[0]
    if n >= 256:
        n_pad = pl.cdiv(n, 128) * 128
        if n_pad != n:
            x = jnp.pad(x, ((0, n_pad - n), (0, 0)))
        tile = 256 if (n_pad % 256 == 0 and n_pad >= 512) else 128
        return x, n_pad, tile
    return x, n, n


def cosine_sim_transposed(img_embs, cap_embs):
    Bi, E = img_embs.shape
    Bc = cap_embs.shape[0]
    cap_p, Bc_p, tc = _prep_sim_operand(cap_embs.astype(jnp.bfloat16))
    img_p, Bi_p, ti = _prep_sim_operand(img_embs.astype(jnp.bfloat16))

    out = pl.pallas_call(
        _cosine_sim_t_kernel,
        out_shape=jax.ShapeDtypeStruct((Bc_p, Bi_p), jnp.float32),
        grid_spec=pltpu.PrefetchScalarGridSpec(
            num_scalar_prefetch=0,
            grid=(Bc_p // tc, Bi_p // ti),
            in_specs=[
                pl.BlockSpec((tc, E), lambda j, i: (j, 0)),
                pl.BlockSpec((ti, E), lambda j, i: (i, 0)),
            ],
            out_specs=pl.BlockSpec((tc, ti), lambda j, i: (j, i)),
        ),
        compiler_params=pltpu.CompilerParams(
            dimension_semantics=("parallel", "parallel")),
    )(cap_p, img_p)
    return out[:Bc, :Bi]


# ----------------------------------------------------------------------------------
# Parameters (deterministic, matches init_weights: xavier-uniform weights, zero bias).
# Weights / embedding table stored bf16 (streaming dtype); biases stay f32.
# ----------------------------------------------------------------------------------
def _xavier_uniform(key, fan_in, fan_out):
    r = float(np.sqrt(6.0) / np.sqrt(fan_in + fan_out))
    return jax.random.uniform(key, (fan_in, fan_out), jnp.float32, -r, r)


def init_params(key, vocab_size, img_dim, word_dim, emb_dim):
    k0, k1, k2 = jax.random.split(key, 3)
    return {
        "w_img": _xavier_uniform(k0, img_dim, emb_dim).astype(jnp.bfloat16),
        "b_img": jnp.zeros((1, emb_dim), jnp.float32),
        "word_embed": (jax.random.normal(k1, (vocab_size, word_dim), jnp.float32)
                       * 0.1).astype(jnp.bfloat16),
        "w_cap": _xavier_uniform(k2, word_dim, emb_dim).astype(jnp.bfloat16),
        "b_cap": jnp.zeros((1, emb_dim), jnp.float32),
    }


# ----------------------------------------------------------------------------------
# Full forward. Hot paths are the Pallas kernels; the only wrapper-side math is the
# one-time (V, word_dim) @ (word_dim, E) table pre-projection for the fused gather.
# ----------------------------------------------------------------------------------
_FUSED_VOCAB_BYTES = 4 << 20   # fuse the embedding lookup when (V, E) bf16 fits this budget


def global2global_forward(params, images, captions, cap_lens):
    B_img, n_regions, _ = images.shape

    # img_enc + agg_img (eval mode: img_lens[:] = n_regions, no instance dropout)
    img_lens = jnp.full((B_img,), n_regions, dtype=jnp.int32)
    img_glob = encode_and_aggregate(images, img_lens, params["w_img"], params["b_img"])

    # cap_enc + agg_cap
    V, _ = params["word_embed"].shape
    E = params["w_cap"].shape[1]
    if V * E * 2 <= _FUSED_VOCAB_BYTES:
        # Embed(ids) @ W == onehot(ids) @ (Embed_table @ W): pre-project the table once,
        # keep it resident in VMEM and do the gather inside the kernel.
        proj_table = jnp.dot(params["word_embed"], params["w_cap"],
                             preferred_element_type=jnp.float32).astype(jnp.bfloat16)
        cap_glob = encode_ids_and_aggregate(captions, cap_lens, proj_table, params["b_cap"])
    else:
        # TODO(synk): large-vocab path should use scalar-prefetched ids + in-kernel DMA
        #             gather instead of this XLA gather HBM round trip.
        word_vecs = params["word_embed"][captions]
        cap_glob = encode_and_aggregate(word_vecs, cap_lens, params["w_cap"], params["b_cap"])

    # sim_enc (SimCosine) followed by .permute(1, 0)
    return cosine_sim_transposed(img_glob, cap_glob)           # (n_cap, n_img)


if __name__ == "__main__":
    key = jax.random.PRNGKey(0)
    B = 8            # batch (images and captions)
    n_regions = 8    # image regions
    img_dim = 128    # precomputed region feature dim (128-aligned: full vreg lanes)
    seq_len = 8      # caption length (padded)
    word_dim = 128
    emb_dim = 128
    vocab = 64

    kp, ki, kc = jax.random.split(key, 3)
    params = init_params(kp, vocab, img_dim, word_dim, emb_dim)

    images = jax.random.normal(ki, (B, n_regions, img_dim), jnp.float32).astype(jnp.bfloat16)
    captions = jax.random.randint(kc, (B, seq_len), 0, vocab, jnp.int32)
    cap_lens = jnp.array([seq_len, 5, 7, 3, seq_len, 6, 2, 4], dtype=jnp.int32)

    sims_t = global2global_forward(params, images, captions, cap_lens)
    sims_t = jax.block_until_ready(sims_t)

    assert sims_t.shape == (B, B), sims_t.shape
    assert bool(jnp.all(jnp.isfinite(sims_t)))
    # cosine similarities of unit vectors (small slack for bf16 embeddings)
    assert bool(jnp.all(jnp.abs(sims_t) <= 1.0 + 2e-2))
    print("KERNEL_OK")
</pallas_src>

<mosaic_0001>
module attributes {stable_mosaic.version = 11 : i64} {
  func.func @_encode_agg_kernel(%arg0: i32, %arg1: memref<8x1xi32, #tpu.memory_space<vmem>>, %arg2: memref<8x8x128xbf16, #tpu.memory_space<vmem>>, %arg3: memref<128x128xbf16, #tpu.memory_space<vmem>>, %arg4: memref<1x128xf32, #tpu.memory_space<vmem>>, %arg5: memref<8x128xbf16, #tpu.memory_space<vmem>>) attributes {dimension_semantics = [#tpu.dimension_semantics<parallel>], iteration_bounds = array<i64: 1>, scalar_prefetch = 0 : i64, scratch_operands = 0 : i64, tpu.core_type = #tpu.core_type<tc>, window_params = [{transform_indices = @transform_0, window_bounds = array<i64: 8, 1>}, {transform_indices = @transform_1, window_bounds = array<i64: 8, 8, 128>}, {pipeline_mode = #tpu.pipeline_mode<synchronous>, transform_indices = @transform_2, window_bounds = array<i64: 128, 128>}, {pipeline_mode = #tpu.pipeline_mode<synchronous>, transform_indices = @transform_3, window_bounds = array<i64: 1, 128>}, {transform_indices = @transform_4, window_bounds = array<i64: 8, 128>}]} {
    %c0 = arith.constant 0 : index
    %c0_0 = arith.constant 0 : index
    %c0_1 = arith.constant 0 : index
    %0 = vector.load %arg2[%c0, %c0_0, %c0_1] : memref<8x8x128xbf16, #tpu.memory_space<vmem>>, vector<8x8x128xbf16>
    %1 = vector.shape_cast %0 : vector<8x8x128xbf16> to vector<64x128xbf16>
    %c0_2 = arith.constant 0 : index
    %c0_3 = arith.constant 0 : index
    %2 = vector.load %arg3[%c0_2, %c0_3] : memref<128x128xbf16, #tpu.memory_space<vmem>>, vector<128x128xbf16>
    %cst = arith.constant dense<0.000000e+00> : vector<64x128xf32>
    %3 = tpu.matmul %1, %2, %cst {dimension_numbers = #tpu.dot_dimension_numbers<[1], [0], [0], [1], [0, 0, 1, 1], [], []>} : vector<64x128xbf16>, vector<128x128xbf16>, vector<64x128xf32> -> vector<64x128xf32>
    %c0_4 = arith.constant 0 : index
    %c0_5 = arith.constant 0 : index
    %4 = vector.load %arg4[%c0_4, %c0_5] : memref<1x128xf32, #tpu.memory_space<vmem>>, vector<1x128xf32>
    %5 = vector.broadcast %4 : vector<1x128xf32> to vector<64x128xf32>
    %6 = arith.addf %3, %5 : vector<64x128xf32>
    %7 = arith.mulf %6, %6 : vector<64x128xf32>
    %cst_6 = arith.constant dense<0.000000e+00> : vector<64xf32>
    %8 = vector.multi_reduction <add>, %7, %cst_6 [1] : vector<64x128xf32> to vector<64xf32>
    %9 = vector.shape_cast %8 : vector<64xf32> to vector<64x1xf32>
    %cst_7 = arith.constant 9.99999996E-13 : f32
    %10 = vector.broadcast %cst_7 : f32 to vector<64x1xf32>
    %11 = arith.addf %9, %10 : vector<64x1xf32>
    %12 = math.rsqrt %11 : vector<64x1xf32>
    %13 = vector.broadcast %12 : vector<64x1xf32> to vector<64x128xf32>
    %14 = arith.mulf %6, %13 : vector<64x128xf32>
    %15 = vector.shape_cast %14 : vector<64x128xf32> to vector<8x8x128xf32>
    %16 = tpu.iota {dimensions = array<i32: 1>} : vector<8x8xi32>
    %c0_8 = arith.constant 0 : index
    %c0_9 = arith.constant 0 : index
    %17 = vector.load %arg1[%c0_8, %c0_9] : memref<8x1xi32, #tpu.memory_space<vmem>>, vector<8x1xi32>
    %18 = vector.broadcast %17 : vector<8x1xi32> to vector<8x8xi32>
    %19 = arith.cmpi slt, %16, %18 : vector<8x8xi32>
    %20 = arith.extui %19 : vector<8x8xi1> to vector<8x8xi32>
    %21 = arith.sitofp %20 : vector<8x8xi32> to vector<8x8xf32>
    %22 = vector.shape_cast %21 : vector<8x8xf32> to vector<8x8x1xf32>
    %23 = vector.broadcast %22 : vector<8x8x1xf32> to vector<8x8x128xf32>
    %24 = arith.mulf %15, %23 : vector<8x8x128xf32>
    %cst_10 = arith.constant dense<0.000000e+00> : vector<8x128xf32>
    %25 = vector.multi_reduction <add>, %24, %cst_10 [1] : vector<8x8x128xf32> to vector<8x128xf32>
    %26 = arith.mulf %25, %25 : vector<8x128xf32>
    %cst_11 = arith.constant dense<0.000000e+00> : vector<8xf32>
    %27 = vector.multi_reduction <add>, %26, %cst_11 [1] : vector<8x128xf32> to vector<8xf32>
    %28 = vector.shape_cast %27 : vector<8xf32> to vector<8x1xf32>
    %cst_12 = arith.constant 9.99999996E-13 : f32
    %29 = vector.broadcast %cst_12 : f32 to vector<8x1xf32>
    %30 = arith.addf %28, %29 : vector<8x1xf32>
    %31 = math.rsqrt %30 : vector<8x1xf32>
    %32 = vector.broadcast %31 : vector<8x1xf32> to vector<8x128xf32>
    %33 = arith.mulf %25, %32 : vector<8x128xf32>
    %34 = arith.truncf %33 : vector<8x128xf32> to vector<8x128xbf16>
    %c0_13 = arith.constant 0 : index
    %c0_14 = arith.constant 0 : index
    %35 = vector.load %arg5[%c0_13, %c0_14] : memref<8x128xbf16, #tpu.memory_space<vmem>>, vector<8x128xbf16>
    tpu.vector_store %arg5[%c0_13, %c0_14], %34 {strides = array<i32>} : memref<8x128xbf16, #tpu.memory_space<vmem>>, vector<8x128xbf16>,
    return
  }
  func.func @transform_0(%arg0: i32) -> (i32, i32) {
    %c0_i32 = arith.constant 0 : i32
    %c0_i32_0 = arith.constant 0 : i32
    return %arg0, %c0_i32 : i32, i32
  }
  func.func @transform_1(%arg0: i32) -> (i32, i32, i32) {
    %c0_i32 = arith.constant 0 : i32
    %c0_i32_0 = arith.constant 0 : i32
    %c0_i32_1 = arith.constant 0 : i32
    return %arg0, %c0_i32, %c0_i32_0 : i32, i32, i32
  }
  func.func @transform_2(%arg0: i32) -> (i32, i32) {
    %c0_i32 = arith.constant 0 : i32
    %c0_i32_0 = arith.constant 0 : i32
    %c0_i32_1 = arith.constant 0 : i32
    return %c0_i32, %c0_i32_0 : i32, i32
  }
  func.func @transform_3(%arg0: i32) -> (i32, i32) {
    %c0_i32 = arith.constant 0 : i32
    %c0_i32_0 = arith.constant 0 : i32
    %c0_i32_1 = arith.constant 0 : i32
    return %c0_i32, %c0_i32_0 : i32, i32
  }
  func.func @transform_4(%arg0: i32) -> (i32, i32) {
    %c0_i32 = arith.constant 0 : i32
    %c0_i32_0 = arith.constant 0 : i32
    return %arg0, %c0_i32 : i32, i32
  }
}

</mosaic_0001>

<llo_original>
// kernel: tpu_custom_call.1
$region0: #{tpu_custom_call.1}
  #allocation0 [shape = 'u32[]', space=smem, size = 0x4, offset = 0x4, fixed_abs, tag = 'smem constant byte address 0x4 - core index']
  #allocation1 [shape = 'u32[72,128]{1,0:T(1,128)}', space=vmem, size = 0x9000, scoped, tag = 'internal scratch']
  %s0 = inlined_call_operand.vmem [shape: s32[8,1], index: 0, kind: input, shape index: {}]
  %s1 = inlined_call_operand.hbm [shape: bf16[8,8,128], index: 1, kind: input, shape index: {}]
  %s2 = inlined_call_operand.hbm [shape: bf16[128,128], index: 2, kind: input, shape index: {}]
  %s3 = inlined_call_operand.vmem [shape: f32[1,128], index: 3, kind: input, shape index: {}]
  %s4 = inlined_call_operand.hbm [shape: bf16[8,128], index: 4, kind: output, shape index: {}]
  %s5 = sld [smem:[#allocation0]]
  $region34: #{tpu_custom_call.1} parent=0
    _
  %s7 = ssub.s32 1, %s5
  %s8 = scalar_select 0, %s7, %s5
  $region1: #{tpu_custom_call.1} parent=0
    #allocation2 [shape = 'u8[16384]{0}', space=vmem, size = 0x4000, scoped, tag = 'input window, operand 1, single buffered']
    #allocation3 [shape = 's32[1]{0}', space=sflag, size = 0x4, scoped, tag = 'scoped memory for tpu_custom_call.1']
    #allocation4 [shape = 's32[1]{0}', space=sflag, size = 0x4, scoped, tag = 'scoped memory for tpu_custom_call.1']
    #allocation5 [shape = 'u8[32768]{0}', space=vmem, size = 0x8000, scoped, tag = 'input window, operand 2, single buffered']
    #allocation6 [shape = 's32[1]{0}', space=sflag, size = 0x4, scoped, tag = 'scoped memory for tpu_custom_call.1']
    #allocation7 [shape = 'u8[2048]{0}', space=vmem, size = 0x800, scoped, tag = 'output window, operand 0, single buffered']
    %9 = vsyncpa [#allocation3], 0
    %10 = vsyncpa [#allocation6], 0
    %11 = vsyncpa [#allocation4], 0
    // Predicated region
    $region2: #{tpu_custom_call.1} parent=1 // pred_check
      _
    $region3: #{tpu_custom_call.1} parent=1 // pred_check_branch
      %13 = sbr.rel (0) target = $region5
    $region4: #{tpu_custom_call.1} parent=1 // pred_region
      _
    $region5: #{tpu_custom_call.1} parent=1 // pred_fallthru
      _
    // Predicated region
    $region6: #{tpu_custom_call.1} parent=1 // pred_check
      _
    $region7: #{tpu_custom_call.1} parent=1 // pred_check_branch
      %15 = sbr.rel (0) target = $region9
    $region8: #{tpu_custom_call.1} parent=1 // pred_region
      %17 = vsyncadd [#allocation3], 0
      %s18 = sshll.u32 %s1, 4
      %s19 = int_to_ptr.hbm [resolvable:$true] %s18
      %s20 = sshll.u32 [#allocation2], 4
      %s21 = int_to_ptr.vmem [resolvable:$true] %s20
      %26 = dma.hbm_to_vmem [thread:$0]  %s19, 512, %s21, [#allocation3], 64, 64, 4
    $region9: #{tpu_custom_call.1} parent=1 // pred_fallthru
      _
    // Predicated region
    $region10: #{tpu_custom_call.1} parent=1 // pred_check
      _
    $region11: #{tpu_custom_call.1} parent=1 // pred_check_branch
      %28 = sbr.rel (0) target = $region13
    $region12: #{tpu_custom_call.1} parent=1 // pred_region
      %30 = vsyncadd [#allocation6], 0
      %s31 = sshll.u32 %s2, 4
      %s32 = int_to_ptr.hbm [resolvable:$true] %s31
      %s33 = sshll.u32 [#allocation5], 4
      %s34 = int_to_ptr.vmem [resolvable:$true] %s33
      %39 = dma.hbm_to_vmem [thread:$0]  %s32, 1024, %s34, [#allocation6], 64, 64, 4
    $region13: #{tpu_custom_call.1} parent=1 // pred_fallthru
      _
    // Predicated region
    $region14: #{tpu_custom_call.1} parent=1 // pred_check
      _
    $region15: #{tpu_custom_call.1} parent=1 // pred_check_branch
      %41 = sbr.rel (0) target = $region17
    $region16: #{tpu_custom_call.1} parent=1 // pred_region
      _
    $region17: #{tpu_custom_call.1} parent=1 // pred_fallthru
      _
    // Predicated region
    $region18: #{tpu_custom_call.1} parent=1 // pred_check
      _
    $region19: #{tpu_custom_call.1} parent=1 // pred_check_branch
      %43 = sbr.rel (0) target = $region21
    $region20: #{tpu_custom_call.1} parent=1 // pred_region
      %45 = dma.done [#allocation3], 512
    $region21: #{tpu_custom_call.1} parent=1 // pred_fallthru
      _
    // Predicated region
    $region22: #{tpu_custom_call.1} parent=1 // pred_check
      _
    $region23: #{tpu_custom_call.1} parent=1 // pred_check_branch
      %47 = sbr.rel (0) target = $region25
    $region24: #{tpu_custom_call.1} parent=1 // pred_region
      %49 = dma.done [#allocation6], 1024
    $region25: #{tpu_custom_call.1} parent=1 // pred_fallthru
      _
    %v50 = vld [vmem:[#allocation2] sm:$0xf]
    %v51 = vld [vmem:[#allocation2 + $0x4] sm:$0xf]
    %v52 = vld [vmem:[#allocation2 + $0x8] sm:$0xf]
    %v53 = vld [vmem:[#allocation2 + $0xc] sm:$0xf]
    %v54 = vld [vmem:[#allocation2 + $0x10] sm:$0xf]
    %v55 = vld [vmem:[#allocation2 + $0x14] sm:$0xf]
    %v56 = vld [vmem:[#allocation2 + $0x18] sm:$0xf]
    %v57 = vld [vmem:[#allocation2 + $0x1c] sm:$0xf]
    %v58 = vld [vmem:[#allocation5] sm:$0xf]
    %v59 = vld [vmem:[#allocation5 + $0x4] sm:$0xf]
    %v60 = vld [vmem:[#allocation5 + $0x8] sm:$0xf]
    %v61 = vld [vmem:[#allocation5 + $0xc] sm:$0xf]
    %v62 = vld [vmem:[#allocation5 + $0x10] sm:$0xf]
    %v63 = vld [vmem:[#allocation5 + $0x14] sm:$0xf]
    %v64 = vld [vmem:[#allocation5 + $0x18] sm:$0xf]
    %v65 = vld [vmem:[#allocation5 + $0x1c] sm:$0xf]
    %v66 = vld [vmem:[#allocation5 + $0x20] sm:$0xf]
    %v67 = vld [vmem:[#allocation5 + $0x24] sm:$0xf]
    %v68 = vld [vmem:[#allocation5 + $0x28] sm:$0xf]
    %v69 = vld [vmem:[#allocation5 + $0x2c] sm:$0xf]
    %v70 = vld [vmem:[#allocation5 + $0x30] sm:$0xf]
    %v71 = vld [vmem:[#allocation5 + $0x34] sm:$0xf]
    %v72 = vld [vmem:[#allocation5 + $0x38] sm:$0xf]
    %v73 = vld [vmem:[#allocation5 + $0x3c] sm:$0xf]
    %v74 = vld [vmem:[%s3] sm:$0x1]
    %v76 = vperm.slane %v74, 0
    %v86 = vunpack.c.l.b16 %v50
    %v87 = vunpack.c.l.b16 %v51
    %v88 = vunpack.c.l.b16 %v52
    %v89 = vunpack.c.l.b16 %v53
    %v90 = vunpack.c.l.b16 %v54
    %v91 = vunpack.c.l.b16 %v55
    %v92 = vunpack.c.l.b16 %v56
    %v93 = vunpack.c.l.b16 %v57
    %v94 = vpack.c.b16 %v87, %v86
    %v95 = vpack.c.b16 %v89, %v88
    %v96 = vpack.c.b16 %v91, %v90
    %v97 = vpack.c.b16 %v93, %v92
    %v118 = vunpack.c.l.b16 %v58
    %v119 = vunpack.c.l.b16 %v59
    %v120 = vunpack.c.l.b16 %v60
    %v121 = vunpack.c.l.b16 %v61
    %v122 = vunpack.c.l.b16 %v62
    %v123 = vunpack.c.l.b16 %v63
    %v124 = vunpack.c.l.b16 %v64
    %v125 = vunpack.c.l.b16 %v65
    %v126 = vunpack.c.l.b16 %v66
    %v127 = vunpack.c.l.b16 %v67
    %v128 = vunpack.c.l.b16 %v68
    %v129 = vunpack.c.l.b16 %v69
    %v130 = vunpack.c.l.b16 %v70
    %v131 = vunpack.c.l.b16 %v71
    %v132 = vunpack.c.l.b16 %v72
    %v133 = vunpack.c.l.b16 %v73
    %v134 = vpack.c.b16 %v119, %v118
    %v135 = vpack.c.b16 %v121, %v120
    %v136 = vpack.c.b16 %v123, %v122
    %v137 = vpack.c.b16 %v125, %v124
    %v138 = vpack.c.b16 %v127, %v126
    %v139 = vpack.c.b16 %v129, %v128
    %v140 = vpack.c.b16 %v131, %v130
    %v141 = vpack.c.b16 %v133, %v132
    %150 = vmatpush.bf16.msra.mxu0 %v141
    %151 = vmatpush.bf16.msra.mxu0 %v140
    %152 = vmatpush.bf16.msra.mxu0 %v139
    %153 = vmatpush.bf16.msra.mxu0 %v138
    %154 = vmatpush.bf16.msra.mxu0 %v137
    %155 = vmatpush.bf16.msra.mxu0 %v136
    %156 = vmatpush.bf16.msra.mxu0 %v135
    %157 = vmatpush.bf16.msra.mxu0 %v134
    %158 = vmatmul.bf16.gmra.mxu0 %v94
    %v159 = vpop.f32.mrf.mxu0
    %v160 = vadd.f32 %v76, %v159
    %v161 = vpop.f32.mrf.mxu0
    %v162 = vadd.f32 %v76, %v161
    %163 = vmatmul.bf16.gmra.mxu0 %v95
    %v164 = vpop.f32.mrf.mxu0
    %v165 = vadd.f32 %v76, %v164
    %v166 = vpop.f32.mrf.mxu0
    %v167 = vadd.f32 %v76, %v166
    %168 = vmatmul.bf16.gmra.mxu0 %v96
    %v169 = vpop.f32.mrf.mxu0
    %v170 = vadd.f32 %v76, %v169
    %v171 = vpop.f32.mrf.mxu0
    %v172 = vadd.f32 %v76, %v171
    %173 = vmatmul.bf16.gmra.mxu0 %v97
    %v174 = vpop.f32.mrf.mxu0
    %v175 = vadd.f32 %v76, %v174
    %v176 = vpop.f32.mrf.mxu0
    %v177 = vadd.f32 %v76, %v176
    %178 = vdwg.mxu0
    %v179 = vmul.f32 %v160, %v160
    %v180 = vmul.f32 %v162, %v162
    %v181 = vmul.f32 %v165, %v165
    %v182 = vmul.f32 %v167, %v167
    %v183 = vmul.f32 %v170, %v170
    %v184 = vmul.f32 %v172, %v172
    %v185 = vmul.f32 %v175, %v175
    %v186 = vmul.f32 %v177, %v177
    %187 = vadd.xlane.f32.xlu0 %v179
    %v188 = vpop.xlane.xlu0 %187
    %189 = vadd.xlane.f32.xlu0 %v180
    %v190 = vpop.xlane.xlu0 %189
    %191 = vadd.xlane.f32.xlu0 %v181
    %v192 = vpop.xlane.xlu0 %191
    %193 = vadd.xlane.f32.xlu0 %v182
    %v194 = vpop.xlane.xlu0 %193
    %195 = vadd.xlane.f32.xlu0 %v183
    %v196 = vpop.xlane.xlu0 %195
    %197 = vadd.xlane.f32.xlu0 %v184
    %v198 = vpop.xlane.xlu0 %197
    %199 = vadd.xlane.f32.xlu0 %v185
    %v200 = vpop.xlane.xlu0 %199
    %201 = vadd.xlane.f32.xlu0 %v186
    %v202 = vpop.xlane.xlu0 %201
    %v203 = vadd.f32 %v188, 1e-12
    %v204 = vadd.f32 %v190, 1e-12
    %v205 = vadd.f32 %v192, 1e-12
    %v206 = vadd.f32 %v194, 1e-12
    %v207 = vadd.f32 %v196, 1e-12
    %v208 = vadd.f32 %v198, 1e-12
    %v209 = vadd.f32 %v200, 1e-12
    %v210 = vadd.f32 %v202, 1e-12
    %v211 = vrsqrt.pop %v203
    %v212 = vmul.f32 %v211, %v203
    %v213 = vmul.f32 %v212, %v211
    %v214 = vmul.f32 0.5, %v213
    %v215 = vsub.f32 1.5, %v214
    %v216 = vmul.f32 %v211, %v215
    %vm217 = vweird.f32 %v203
    %vm218 = vweird.f32 %v211
    %vm219 = vmor %vm217, %vm218
    %v220 = vsel %vm219, %v211, %v216
    %v221 = vrsqrt.pop %v204
    %v222 = vmul.f32 %v221, %v204
    %v223 = vmul.f32 %v222, %v221
    %v224 = vmul.f32 0.5, %v223
    %v225 = vsub.f32 1.5, %v224
    %v226 = vmul.f32 %v221, %v225
    %vm227 = vweird.f32 %v204
    %vm228 = vweird.f32 %v221
    %vm229 = vmor %vm227, %vm228
    %v230 = vsel %vm229, %v221, %v226
    %v231 = vrsqrt.pop %v205
    %v232 = vmul.f32 %v231, %v205
    %v233 = vmul.f32 %v232, %v231
    %v234 = vmul.f32 0.5, %v233
    %v235 = vsub.f32 1.5, %v234
    %v236 = vmul.f32 %v231, %v235
    %vm237 = vweird.f32 %v205
    %vm238 = vweird.f32 %v231
    %vm239 = vmor %vm237, %vm238
    %v240 = vsel %vm239, %v231, %v236
    %v241 = vrsqrt.pop %v206
    %v242 = vmul.f32 %v241, %v206
    %v243 = vmul.f32 %v242, %v241
    %v244 = vmul.f32 0.5, %v243
    %v245 = vsub.f32 1.5, %v244
    %v246 = vmul.f32 %v241, %v245
    %vm247 = vweird.f32 %v206
    %vm248 = vweird.f32 %v241
    %vm249 = vmor %vm247, %vm248
    %v250 = vsel %vm249, %v241, %v246
    %v251 = vrsqrt.pop %v207
    %v252 = vmul.f32 %v251, %v207
    %v253 = vmul.f32 %v252, %v251
    %v254 = vmul.f32 0.5, %v253
    %v255 = vsub.f32 1.5, %v254
    %v256 = vmul.f32 %v251, %v255
    %vm257 = vweird.f32 %v207
    %vm258 = vweird.f32 %v251
    %vm259 = vmor %vm257, %vm258
    %v260 = vsel %vm259, %v251, %v256
    %v261 = vrsqrt.pop %v208
    %v262 = vmul.f32 %v261, %v208
    %v263 = vmul.f32 %v262, %v261
    %v264 = vmul.f32 0.5, %v263
    %v265 = vsub.f32 1.5, %v264
    %v266 = vmul.f32 %v261, %v265
    %vm267 = vweird.f32 %v208
    %vm268 = vweird.f32 %v261
    %vm269 = vmor %vm267, %vm268
    %v270 = vsel %vm269, %v261, %v266
    %v271 = vrsqrt.pop %v209
    %v272 = vmul.f32 %v271, %v209
    %v273 = vmul.f32 %v272, %v271
    %v274 = vmul.f32 0.5, %v273
    %v275 = vsub.f32 1.5, %v274
    %v276 = vmul.f32 %v271, %v275
    %vm277 = vweird.f32 %v209
    %vm278 = vweird.f32 %v271
    %vm279 = vmor %vm277, %vm278
    %v280 = vsel %vm279, %v271, %v276
    %v281 = vrsqrt.pop %v210
    %v282 = vmul.f32 %v281, %v210
    %v283 = vmul.f32 %v282, %v281
    %v284 = vmul.f32 0.5, %v283
    %v285 = vsub.f32 1.5, %v284
    %v286 = vmul.f32 %v281, %v285
    %vm287 = vweird.f32 %v210
    %vm288 = vweird.f32 %v281
    %vm289 = vmor %vm287, %vm288
    %v290 = vsel %vm289, %v281, %v286
    %v291 = vmul.f32 %v160, %v220
    %v292 = vmul.f32 %v162, %v230
    %v293 = vmul.f32 %v165, %v240
    %v294 = vmul.f32 %v167, %v250
    %v295 = vmul.f32 %v170, %v260
    %v296 = vmul.f32 %v172, %v270
    %v297 = vmul.f32 %v175, %v280
    %v298 = vmul.f32 %v177, %v290
    %v299 = vlaneseq
    %v300 = vand.u32 %v299, 127
    %v301 = vld [vmem:[%s0] sm:$0xff]
    %302 = vset.pattern.permute.xlu0 0
    %303 = vperm.xlu0 %302, %v301
    %v304 = vpop.permute.xlu0 %303
    %vm305 = vcmp.lt.s32.totalorder %v300, %v304
    %v306 = vsel %vm305, 1, 0
    %v307 = vcvt.s32.f32 %v306
    %v308 = vperm.slane %v307, 0
    %v309 = vlaneseq
    %v310 = vshrl.u32 %v309, 7
    %312 = vset.pattern.permute.xlu0 %v310
    %313 = vperm.xlu0 %312, %v308
    %v314 = vpop.permute.xlu0 %313
    %v315 = vperm.slane %v307, 1
    %v316 = vlaneseq
    %v317 = vshrl.u32 %v316, 7
    %319 = vset.pattern.permute.xlu0 %v317
    %320 = vperm.xlu0 %319, %v315
    %v321 = vpop.permute.xlu0 %320
    %v322 = vperm.slane %v307, 2
    %v323 = vlaneseq
    %v324 = vshrl.u32 %v323, 7
    %326 = vset.pattern.permute.xlu0 %v324
    %327 = vperm.xlu0 %326, %v322
    %v328 = vpop.permute.xlu0 %327
    %v329 = vperm.slane %v307, 3
    %v330 = vlaneseq
    %v331 = vshrl.u32 %v330, 7
    %333 = vset.pattern.permute.xlu0 %v331
    %334 = vperm.xlu0 %333, %v329
    %v335 = vpop.permute.xlu0 %334
    %v336 = vperm.slane %v307, 4
    %v337 = vlaneseq
    %v338 = vshrl.u32 %v337, 7
    %340 = vset.pattern.permute.xlu0 %v338
    %341 = vperm.xlu0 %340, %v336
    %v342 = vpop.permute.xlu0 %341
    %v343 = vperm.slane %v307, 5
    %v344 = vlaneseq
    %v345 = vshrl.u32 %v344, 7
    %347 = vset.pattern.permute.xlu0 %v345
    %348 = vperm.xlu0 %347, %v343
    %v349 = vpop.permute.xlu0 %348
    %v350 = vperm.slane %v307, 6
    %v351 = vlaneseq
    %v352 = vshrl.u32 %v351, 7
    %354 = vset.pattern.permute.xlu0 %v352
    %355 = vperm.xlu0 %354, %v350
    %v356 = vpop.permute.xlu0 %355
    %v357 = vperm.slane %v307, 7
    %v358 = vlaneseq
    %v359 = vshrl.u32 %v358, 7
    %361 = vset.pattern.permute.xlu0 %v359
    %362 = vperm.xlu0 %361, %v357
    %v363 = vpop.permute.xlu0 %362
    %v364 = vmul.f32 %v291, %v314
    %v365 = vmul.f32 %v292, %v321
    %v366 = vmul.f32 %v293, %v328
    %v367 = vmul.f32 %v294, %v335
    %v368 = vmul.f32 %v295, %v342
    %v369 = vmul.f32 %v296, %v349
    %v370 = vmul.f32 %v297, %v356
    %v371 = vmul.f32 %v298, %v363
    %v372 = vrot.slane %v364, 4
    %v373 = vadd.f32 %v364, %v372
    %v374 = vrot.slane %v373, 2
    %v375 = vadd.f32 %v373, %v374
    %v376 = vrot.slane %v375, 1
    %v377 = vadd.f32 %v375, %v376
    %v378 = vrot.slane %v365, 4
    %v379 = vadd.f32 %v365, %v378
    %v380 = vrot.slane %v379, 2
    %v381 = vadd.f32 %v379, %v380
    %v382 = vrot.slane %v381, 1
    %v383 = vadd.f32 %v381, %v382
    %v384 = vrot.slane %v366, 4
    %v385 = vadd.f32 %v366, %v384
    %v386 = vrot.slane %v385, 2
    %v387 = vadd.f32 %v385, %v386
    %v388 = vrot.slane %v387, 1
    %v389 = vadd.f32 %v387, %v388
    %v390 = vrot.slane %v367, 4
    %v391 = vadd.f32 %v367, %v390
    %v392 = vrot.slane %v391, 2
    %v393 = vadd.f32 %v391, %v392
    %v394 = vrot.slane %v393, 1
    %v395 = vadd.f32 %v393, %v394
    %v396 = vrot.slane %v368, 4
    %v397 = vadd.f32 %v368, %v396
    %v398 = vrot.slane %v397, 2
    %v399 = vadd.f32 %v397, %v398
    %v400 = vrot.slane %v399, 1
    %v401 = vadd.f32 %v399, %v400
    %v402 = vrot.slane %v369, 4
    %v403 = vadd.f32 %v369, %v402
    %v404 = vrot.slane %v403, 2
    %v405 = vadd.f32 %v403, %v404
    %v406 = vrot.slane %v405, 1
    %v407 = vadd.f32 %v405, %v406
    %v408 = vrot.slane %v370, 4
    %v409 = vadd.f32 %v370, %v408
    %v410 = vrot.slane %v409, 2
    %v411 = vadd.f32 %v409, %v410
    %v412 = vrot.slane %v411, 1
    %v413 = vadd.f32 %v411, %v412
    %v414 = vrot.slane %v371, 4
    %v415 = vadd.f32 %v371, %v414
    %v416 = vrot.slane %v415, 2
    %v417 = vadd.f32 %v415, %v416
    %v418 = vrot.slane %v417, 1
    %v419 = vadd.f32 %v417, %v418
    %v420 = vmul.f32 %v377, %v377
    %v421 = vmul.f32 %v383, %v383
    %v422 = vmul.f32 %v389, %v389
    %v423 = vmul.f32 %v395, %v395
    %v424 = vmul.f32 %v401, %v401
    %v425 = vmul.f32 %v407, %v407
    %v426 = vmul.f32 %v413, %v413
    %v427 = vmul.f32 %v419, %v419
    %vm436 = vcmask 1041409
    %v437 = vsel %vm436, %v421, %v420
    %vm438 = vcmask 1042434
    %v439 = vsel %vm438, %v422, %v437
    %vm440 = vcmask 1043459
    %v441 = vsel %vm440, %v423, %v439
    %vm442 = vcmask 1044484
    %v443 = vsel %vm442, %v424, %v441
    %vm444 = vcmask 1045509
    %v445 = vsel %vm444, %v425, %v443
    %vm446 = vcmask 1046534
    %v447 = vsel %vm446, %v426, %v445
    %vm448 = vcmask 1047559
    %v449 = vsel %vm448, %v427, %v447
    %451 = vadd.xlane.f32.xlu0 %v449
    %v452 = vpop.xlane.xlu0 %451
    %v453 = vadd.f32 %v452, 1e-12
    %v454 = vrsqrt.pop %v453
    %v455 = vmul.f32 %v454, %v453
    %v456 = vmul.f32 %v455, %v454
    %v457 = vmul.f32 0.5, %v456
    %v458 = vsub.f32 1.5, %v457
    %v459 = vmul.f32 %v454, %v458
    %vm460 = vweird.f32 %v453
    %vm461 = vweird.f32 %v454
    %vm462 = vmor %vm460, %vm461
    %v463 = vsel %vm462, %v454, %v459
    %v465 = vrot.slane %v463, 1
    %v466 = vrot.slane %v463, 2
    %v467 = vrot.slane %v463, 3
    %v468 = vrot.slane %v463, 4
    %v469 = vrot.slane %v463, 5
    %v470 = vrot.slane %v463, 6
    %v471 = vrot.slane %v463, 7
    %v480 = vmul.f32 %v377, %v463
    %v481 = vmul.f32 %v383, %v465
    %v482 = vmul.f32 %v389, %v466
    %v483 = vmul.f32 %v395, %v467
    %v484 = vmul.f32 %v401, %v468
    %v485 = vmul.f32 %v407, %v469
    %v486 = vmul.f32 %v413, %v470
    %v487 = vmul.f32 %v419, %v471
    %v488 = vpack.c.bf16 %v480, %v480
    %v489 = vpack.c.bf16 %v481, %v481
    %v490 = vpack.c.bf16 %v482, %v482
    %v491 = vpack.c.bf16 %v483, %v483
    %v492 = vpack.c.bf16 %v484, %v484
    %v493 = vpack.c.bf16 %v485, %v485
    %v494 = vpack.c.bf16 %v486, %v486
    %v495 = vpack.c.bf16 %v487, %v487
    %v504 = vunpack.c.l.b16 %v488
    %v505 = vunpack.c.l.b16 %v489
    %v506 = vunpack.c.l.b16 %v490
    %v507 = vunpack.c.l.b16 %v491
    %v508 = vunpack.c.l.b16 %v492
    %v509 = vunpack.c.l.b16 %v493
    %v510 = vunpack.c.l.b16 %v494
    %v511 = vunpack.c.l.b16 %v495
    %v512 = vrot.slane %v505, 7
    %v513 = vsel %vm436, %v512, %v504
    %v514 = vrot.slane %v506, 6
    %v515 = vsel %vm438, %v514, %v513
    %v516 = vrot.slane %v507, 5
    %v517 = vsel %vm440, %v516, %v515
    %v518 = vrot.slane %v508, 4
    %v519 = vsel %vm442, %v518, %v517
    %v520 = vrot.slane %v509, 3
    %v521 = vsel %vm444, %v520, %v519
    %v522 = vrot.slane %v510, 2
    %v523 = vsel %vm446, %v522, %v521
    %v524 = vrot.slane %v511, 1
    %v525 = vsel %vm448, %v524, %v523
    %v526 = vpack.c.b16 %v525, %v525
    %528 = vst [vmem:[#allocation7] sm:$0xf] %v526
    // Predicated region
    $region26: #{tpu_custom_call.1} parent=1 // pred_check
      _
    $region27: #{tpu_custom_call.1} parent=1 // pred_check_branch
      %530 = sbr.rel (0) target = $region29
    $region28: #{tpu_custom_call.1} parent=1 // pred_region
      %532 = vsyncadd [#allocation4], 0
      %s534 = sshll.u32 [#allocation7], 4
      %s535 = int_to_ptr.vmem [resolvable:$true] %s534
      %s536 = sshll.u32 %s4, 4
      %s537 = int_to_ptr.hbm [resolvable:$true] %s536
      %539 = dma.vmem_to_hbm [thread:$0]  %s535, 64, %s537, [#allocation4]
    $region29: #{tpu_custom_call.1} parent=1 // pred_fallthru
      _
    // Predicated region
    $region30: #{tpu_custom_call.1} parent=1 // pred_check
      _
    $region31: #{tpu_custom_call.1} parent=1 // pred_check_branch
      %541 = sbr.rel (0) target = $region33
    $region32: #{tpu_custom_call.1} parent=1 // pred_region
      %543 = dma.done [#allocation4], 64
    $region33: #{tpu_custom_call.1} parent=1 // pred_fallthru
      _
    %544 = vsyncpa [#allocation3], 1
    %545 = vsyncpa [#allocation6], 1
    %546 = vsyncpa [#allocation4], 1

</llo_original>
